<compile_context>
chip_gen: v7x
topology: tpu7x:2x2x1
jax: 0.10.0
libtpu: 0.0.40
codegen_flags: <defaults>
</compile_context>

<pallas_src>
import jax
import jax.numpy as jnp
from jax.experimental import pallas as pl
from jax.experimental.pallas import tpu as pltpu


# ---------------------------------------------------------------------------
# Kernels
# ---------------------------------------------------------------------------

def _fused_both_layers_kernel(a_ref, invd_ref, x_ref,
                              w1l_ref, w1r_ref, b1_ref,
                              w2l_ref, w2r_ref, b2_ref,
                              o_ref):
    """Whole padded graph in one block: both SAGEConv layers in a single call."""
    a = a_ref[...].astype(jnp.bfloat16)        # int8 counts -> bf16 (VPU upcast)
    x = x_ref[...]                             # bf16
    inv_d = invd_ref[...]                      # f32 (N, 1)

    # Layer 1: h1 = relu(mean_agg(x) @ W1l + x @ W1r + b1)
    agg1 = jnp.dot(a, x, preferred_element_type=jnp.float32) * inv_d
    h1 = jnp.maximum(
        jnp.dot(agg1.astype(jnp.bfloat16), w1l_ref[...],
                preferred_element_type=jnp.float32)
        + jnp.dot(x, w1r_ref[...], preferred_element_type=jnp.float32)
        + b1_ref[...], 0.0)
    h1b = h1.astype(jnp.bfloat16)

    # Layer 2 (reassociated): out = inv_d*(A @ (h1 @ W2l)) + h1 @ W2r + b2
    hw = jnp.dot(h1b, w2l_ref[...],
                 preferred_element_type=jnp.float32).astype(jnp.bfloat16)
    agg2 = jnp.dot(a, hw, preferred_element_type=jnp.float32) * inv_d
    o_ref[...] = (agg2
                  + jnp.dot(h1b, w2r_ref[...], preferred_element_type=jnp.float32)
                  + b2_ref[...])


def _sage1_fused_kernel(a_ref, xsrc_ref, xdst_ref, invd_ref,
                        w1l_ref, w1r_ref, b1_ref, w2l_ref, w2r_ref, b2_ref,
                        hw_ref, r2_ref, acc_ref):
    """Layer 1 (+ layer-2 projections), K-tiled over source-node blocks.

    Per (i, k): acc += A[i,k] @ X[k]; at the last k:
      h1 = relu(inv_deg_i * acc @ W1l + X_i @ W1r + b1)
      hw = h1 @ W2l        (bf16, layer-2 aggregation input)
      r2 = h1 @ W2r + b2   (f32, layer-2 root path, ready to add)
    """
    k = pl.program_id(1)

    @pl.when(k == 0)
    def _():
        acc_ref[...] = jnp.zeros_like(acc_ref)

    acc_ref[...] += jnp.dot(a_ref[...].astype(jnp.bfloat16), xsrc_ref[...],
                            preferred_element_type=jnp.float32)

    @pl.when(k == pl.num_programs(1) - 1)
    def _():
        agg = acc_ref[...] * invd_ref[...]                     # exact f32 mean
        h1 = jnp.maximum(
            jnp.dot(agg.astype(jnp.bfloat16), w1l_ref[...],
                    preferred_element_type=jnp.float32)
            + jnp.dot(xdst_ref[...], w1r_ref[...],
                      preferred_element_type=jnp.float32)
            + b1_ref[...], 0.0)
        h1b = h1.astype(jnp.bfloat16)
        hw_ref[...] = jnp.dot(h1b, w2l_ref[...],
                              preferred_element_type=jnp.float32).astype(hw_ref.dtype)
        r2_ref[...] = (jnp.dot(h1b, w2r_ref[...],
                               preferred_element_type=jnp.float32) + b2_ref[...])


def _sage2_agg_kernel(a_ref, hwsrc_ref, invd_ref, r2_ref, o_ref, acc_ref):
    """Layer-2 aggregation, K-tiled: out = inv_deg * (A @ hw) + r2."""
    k = pl.program_id(1)

    @pl.when(k == 0)
    def _():
        acc_ref[...] = jnp.zeros_like(acc_ref)

    acc_ref[...] += jnp.dot(a_ref[...].astype(jnp.bfloat16), hwsrc_ref[...],
                            preferred_element_type=jnp.float32)

    @pl.when(k == pl.num_programs(1) - 1)
    def _():
        o_ref[...] = acc_ref[...] * invd_ref[...] + r2_ref[...]


# ---------------------------------------------------------------------------
# Host-side helpers
# ---------------------------------------------------------------------------

def _round_up(v, m):
    return ((v + m - 1) // m) * m


def _pad2(a, rows, cols):
    return jnp.zeros((rows, cols), a.dtype).at[:a.shape[0], :a.shape[1]].set(a)


def _vmem_limit_bytes():
    """Generation-aware VMEM limit (None -> leave the compiler default)."""
    try:
        kind = jax.devices()[0].device_kind.lower()
    except Exception:
        kind = ""
    if "v7" in kind:
        return 48 * 1024 * 1024      # 64 MiB/TC physical: leave headroom
    if any(t in kind for t in ("v4", "v5", "v6")):
        return 96 * 1024 * 1024      # 128 MiB physical
    return None


def _compiler_params(dim_sem):
    kwargs = dict(dimension_semantics=dim_sem)
    limit = _vmem_limit_bytes()
    if limit is not None:
        kwargs["vmem_limit_bytes"] = limit
    return pltpu.CompilerParams(**kwargs)


_BUFFERED1_OK = None


def _buffered1_supported():
    """Probe once whether pipeline_mode=pl.Buffered(1) lowers on this jax/TPU."""
    global _BUFFERED1_OK
    if _BUFFERED1_OK is None:
        def _copy(x_ref, o_ref):
            o_ref[...] = x_ref[...]
        try:
            fn = pl.pallas_call(
                _copy,
                out_shape=jax.ShapeDtypeStruct((8, 128), jnp.float32),
                grid=(1,),
                in_specs=[pl.BlockSpec((8, 128), lambda i: (0, 0),
                                       pipeline_mode=pl.Buffered(1))],
                out_specs=pl.BlockSpec((8, 128), lambda i: (0, 0)))
            jax.block_until_ready(fn(jnp.zeros((8, 128), jnp.float32)))
            _BUFFERED1_OK = True
        except Exception:
            _BUFFERED1_OK = False
    return _BUFFERED1_OK


# ---------------------------------------------------------------------------
# Forward pass
# ---------------------------------------------------------------------------

def graphsage_forward(x, edge_index, params, *, tm=256, tk=1024):
    """x: [N, Cin] f32; edge_index: [2, E] int32 (row 0 = src j, row 1 = dst i)."""
    n, cin = x.shape
    hid = params["w1l"].shape[1]
    cout = params["w2l"].shape[1]

    # ---- Host glue (plain JAX): integer in-edge counts + exact f32 inv degree.
    src, dst = edge_index[0], edge_index[1]
    counts = jnp.zeros((n, n), jnp.int32).at[dst, src].add(1)
    deg = counts.sum(axis=1, keepdims=True).astype(jnp.float32)
    inv_deg = 1.0 / jnp.maximum(deg, 1.0)          # applied in-kernel (f32)
    a_i8 = counts.astype(jnp.int8)                 # exact for <=127 duplicates

    # ---- Padding: lane-dense channels (128 multiples), sublane-aligned rows.
    cin_p, hid_p, cout_p = (_round_up(c, 128) for c in (cin, hid, cout))
    n8 = _round_up(n, 8)

    w1l = _pad2(params["w1l"], cin_p, hid_p).astype(jnp.bfloat16)
    w1r = _pad2(params["w1r"], cin_p, hid_p).astype(jnp.bfloat16)
    b1 = _pad2(params["b1"], 1, hid_p)                          # f32
    w2l = _pad2(params["w2l"], hid_p, cout_p).astype(jnp.bfloat16)
    w2r = _pad2(params["w2r"], hid_p, cout_p).astype(jnp.bfloat16)
    b2 = _pad2(params["b2"], 1, cout_p)                         # f32

    if n8 <= 512:
        # ------ Small-graph path: everything fits VMEM -> one fused kernel.
        n_pad = n8
        a_p = jnp.zeros((n_pad, n_pad), jnp.int8).at[:n, :n].set(a_i8)
        invd_p = jnp.ones((n_pad, 1), jnp.float32).at[:n, :].set(inv_deg)
        x_p = jnp.zeros((n_pad, cin_p), jnp.bfloat16).at[:n, :cin].set(
            x.astype(jnp.bfloat16))

        full = lambda r, c: pl.BlockSpec((r, c), lambda i: (0, 0))
        out = pl.pallas_call(
            _fused_both_layers_kernel,
            out_shape=jax.ShapeDtypeStruct((n_pad, cout_p), jnp.float32),
            grid=(1,),
            in_specs=[full(n_pad, n_pad), full(n_pad, 1), full(n_pad, cin_p),
                      full(cin_p, hid_p), full(cin_p, hid_p), full(1, hid_p),
                      full(hid_p, cout_p), full(hid_p, cout_p), full(1, cout_p)],
            out_specs=full(n_pad, cout_p),
            compiler_params=_compiler_params(("arbitrary",)),
        )(a_p, invd_p, x_p, w1l, w1r, b1, w2l, w2r, b2)
        return out[:n, :cout]

    # ------ Large-graph path: row blocks (parallel) x source blocks (reduction).
    tm = max(128, (min(tm, 1024) // 128) * 128)        # multiple of 128
    n_pad = _round_up(n8, tm)
    tk_eff = 128                                       # largest 128-mult divisor
    for cand in range(128, min(tk, n_pad) + 1, 128):
        if n_pad % cand == 0:
            tk_eff = cand
    grid = (n_pad // tm, n_pad // tk_eff)

    a_p = jnp.zeros((n_pad, n_pad), jnp.int8).at[:n, :n].set(a_i8)
    invd_p = jnp.ones((n_pad, 1), jnp.float32).at[:n, :].set(inv_deg)
    x_p = jnp.zeros((n_pad, cin_p), jnp.bfloat16).at[:n, :cin].set(
        x.astype(jnp.bfloat16))

    row = lambda c: pl.BlockSpec((tm, c), lambda i, k: (i, 0))
    srcblk = lambda c: pl.BlockSpec((tk_eff, c), lambda i, k: (k, 0))
    a_spec = pl.BlockSpec((tm, tk_eff), lambda i, k: (i, k))
    if _buffered1_supported():
        resident = lambda r, c: pl.BlockSpec((r, c), lambda i, k: (0, 0),
                                             pipeline_mode=pl.Buffered(1))
    else:
        resident = lambda r, c: pl.BlockSpec((r, c), lambda i, k: (0, 0))

    cparams = _compiler_params(("parallel", "arbitrary"))

    # ---- Layer 1 (+ fused layer-2 projections).
    ce1 = pl.CostEstimate(
        flops=2 * n_pad * n_pad * cin_p
              + 4 * n_pad * cin_p * hid_p + 4 * n_pad * hid_p * cout_p,
        transcendentals=0,
        bytes_accessed=n_pad * n_pad + 4 * n_pad * cin_p + 6 * n_pad * cout_p
                       + 4 * cin_p * hid_p + 4 * hid_p * cout_p)
    hw, r2 = pl.pallas_call(
        _sage1_fused_kernel,
        out_shape=(jax.ShapeDtypeStruct((n_pad, cout_p), jnp.bfloat16),
                   jax.ShapeDtypeStruct((n_pad, cout_p), jnp.float32)),
        grid=grid,
        in_specs=[a_spec,                     # A counts block      [TM, TK] int8
                  srcblk(cin_p),              # X source block      [TK, Cin]
                  row(cin_p),                 # X destination block [TM, Cin]
                  row(1),                     # inv_deg block       [TM, 1]
                  resident(cin_p, hid_p), resident(cin_p, hid_p),
                  resident(1, hid_p),
                  resident(hid_p, cout_p), resident(hid_p, cout_p),
                  resident(1, cout_p)],
        out_specs=(row(cout_p), row(cout_p)),
        scratch_shapes=[pltpu.VMEM((tm, cin_p), jnp.float32)],
        compiler_params=cparams,
        cost_estimate=ce1,
    )(a_p, x_p, x_p, invd_p, w1l, w1r, b1, w2l, w2r, b2)

    # ---- Layer-2 aggregation: out = inv_deg * (A @ hw) + r2.
    ce2 = pl.CostEstimate(
        flops=2 * n_pad * n_pad * cout_p,
        transcendentals=0,
        bytes_accessed=n_pad * n_pad + 10 * n_pad * cout_p)
    out = pl.pallas_call(
        _sage2_agg_kernel,
        out_shape=jax.ShapeDtypeStruct((n_pad, cout_p), jnp.float32),
        grid=grid,
        in_specs=[a_spec,                     # A counts block   [TM, TK] int8
                  srcblk(cout_p),             # hw source block  [TK, Cout]
                  row(1),                     # inv_deg          [TM, 1]
                  row(cout_p)],               # root path r2     [TM, Cout]
        out_specs=row(cout_p),
        scratch_shapes=[pltpu.VMEM((tm, cout_p), jnp.float32)],
        compiler_params=cparams,
        cost_estimate=ce2,
    )(a_p, hw, invd_p, r2)

    return out[:n, :cout]


def init_params(key, in_channels, hidden_channels, out_channels):
    """Deterministic synthetic parameters (Linear weights stored as [in, out])."""
    ks = jax.random.split(key, 6)
    scale = 0.1
    return {
        # SAGEConv1: lin_l (aggregated path, with bias), lin_r (root path, no bias)
        "w1l": scale * jax.random.normal(ks[0], (in_channels, hidden_channels), jnp.float32),
        "b1":  scale * jax.random.normal(ks[1], (1, hidden_channels), jnp.float32),
        "w1r": scale * jax.random.normal(ks[2], (in_channels, hidden_channels), jnp.float32),
        # SAGEConv2
        "w2l": scale * jax.random.normal(ks[3], (hidden_channels, out_channels), jnp.float32),
        "b2":  scale * jax.random.normal(ks[4], (1, out_channels), jnp.float32),
        "w2r": scale * jax.random.normal(ks[5], (hidden_channels, out_channels), jnp.float32),
    }


if __name__ == "__main__":
    key = jax.random.PRNGKey(0)
    k_x, k_e, k_p, k_x2, k_e2 = jax.random.split(key, 5)

    IN_C, HID_C, OUT_C = 8, 32, 16
    params = init_params(k_p, IN_C, HID_C, OUT_C)

    def reference(x, edge_index):
        n = x.shape[0]
        adj = jnp.zeros((n, n), jnp.float32).at[edge_index[1], edge_index[0]].add(1.0)
        a_norm = adj / jnp.maximum(adj.sum(axis=1, keepdims=True), 1.0)
        h1 = jnp.maximum(a_norm @ x @ params["w1l"] + x @ params["w1r"] + params["b1"], 0.0)
        return a_norm @ h1 @ params["w2l"] + h1 @ params["w2r"] + params["b2"]

    # --- Small graph (single fused-kernel path). ---
    N1, E1 = 16, 48
    x1 = jax.random.normal(k_x, (N1, IN_C), jnp.float32)
    e1 = jax.random.randint(k_e, (2, E1), 0, N1, jnp.int32)
    out1 = jax.block_until_ready(graphsage_forward(x1, e1, params))
    ref1 = reference(x1, e1)
    assert out1.shape == (N1, OUT_C)
    assert jnp.allclose(out1, ref1, atol=2e-2, rtol=2e-2), (
        float(jnp.max(jnp.abs(out1 - ref1))))

    # --- Larger graph (row/source-tiled two-kernel path). ---
    N2, E2 = 600, 2400
    x2 = jax.random.normal(k_x2, (N2, IN_C), jnp.float32)
    e2 = jax.random.randint(k_e2, (2, E2), 0, N2, jnp.int32)
    out2 = jax.block_until_ready(graphsage_forward(x2, e2, params))
    ref2 = reference(x2, e2)
    assert out2.shape == (N2, OUT_C)
    assert jnp.allclose(out2, ref2, atol=2e-2, rtol=2e-2), (
        float(jnp.max(jnp.abs(out2 - ref2))))

    print("KERNEL_OK")
</pallas_src>

<mosaic_0001>
module attributes {stable_mosaic.version = 11 : i64} {
  func.func @_fused_both_layers_kernel(%arg0: i32, %arg1: memref<16x16xi8, #tpu.memory_space<vmem>>, %arg2: memref<16x1xf32, #tpu.memory_space<vmem>>, %arg3: memref<16x128xbf16, #tpu.memory_space<vmem>>, %arg4: memref<128x128xbf16, #tpu.memory_space<vmem>>, %arg5: memref<128x128xbf16, #tpu.memory_space<vmem>>, %arg6: memref<1x128xf32, #tpu.memory_space<vmem>>, %arg7: memref<128x128xbf16, #tpu.memory_space<vmem>>, %arg8: memref<128x128xbf16, #tpu.memory_space<vmem>>, %arg9: memref<1x128xf32, #tpu.memory_space<vmem>>, %arg10: memref<16x128xf32, #tpu.memory_space<vmem>>) attributes {dimension_semantics = [#tpu.dimension_semantics<arbitrary>], iteration_bounds = array<i64: 1>, scalar_prefetch = 0 : i64, scratch_operands = 0 : i64, tpu.core_type = #tpu.core_type<tc>, window_params = [{pipeline_mode = #tpu.pipeline_mode<synchronous>, transform_indices = @transform_0, window_bounds = array<i64: 16, 16>}, {pipeline_mode = #tpu.pipeline_mode<synchronous>, transform_indices = @transform_1, window_bounds = array<i64: 16, 1>}, {pipeline_mode = #tpu.pipeline_mode<synchronous>, transform_indices = @transform_2, window_bounds = array<i64: 16, 128>}, {pipeline_mode = #tpu.pipeline_mode<synchronous>, transform_indices = @transform_3, window_bounds = array<i64: 128, 128>}, {pipeline_mode = #tpu.pipeline_mode<synchronous>, transform_indices = @transform_4, window_bounds = array<i64: 128, 128>}, {pipeline_mode = #tpu.pipeline_mode<synchronous>, transform_indices = @transform_5, window_bounds = array<i64: 1, 128>}, {pipeline_mode = #tpu.pipeline_mode<synchronous>, transform_indices = @transform_6, window_bounds = array<i64: 128, 128>}, {pipeline_mode = #tpu.pipeline_mode<synchronous>, transform_indices = @transform_7, window_bounds = array<i64: 128, 128>}, {pipeline_mode = #tpu.pipeline_mode<synchronous>, transform_indices = @transform_8, window_bounds = array<i64: 1, 128>}, {pipeline_mode = #tpu.pipeline_mode<synchronous>, transform_indices = @transform_9, window_bounds = array<i64: 16, 128>}]} {
    %c0 = arith.constant 0 : index
    %c0_0 = arith.constant 0 : index
    %0 = vector.load %arg1[%c0, %c0_0] : memref<16x16xi8, #tpu.memory_space<vmem>>, vector<16x16xi8>
    %1 = arith.sitofp %0 : vector<16x16xi8> to vector<16x16xbf16>
    %c0_1 = arith.constant 0 : index
    %c0_2 = arith.constant 0 : index
    %2 = vector.load %arg3[%c0_1, %c0_2] : memref<16x128xbf16, #tpu.memory_space<vmem>>, vector<16x128xbf16>
    %c0_3 = arith.constant 0 : index
    %c0_4 = arith.constant 0 : index
    %3 = vector.load %arg2[%c0_3, %c0_4] : memref<16x1xf32, #tpu.memory_space<vmem>>, vector<16x1xf32>
    %cst = arith.constant dense<0.000000e+00> : vector<16x128xf32>
    %4 = tpu.matmul %1, %2, %cst {dimension_numbers = #tpu.dot_dimension_numbers<[1], [0], [0], [1], [0, 0, 1, 1], [], []>} : vector<16x16xbf16>, vector<16x128xbf16>, vector<16x128xf32> -> vector<16x128xf32>
    %5 = vector.broadcast %3 : vector<16x1xf32> to vector<16x128xf32>
    %6 = arith.mulf %4, %5 : vector<16x128xf32>
    %7 = arith.truncf %6 : vector<16x128xf32> to vector<16x128xbf16>
    %c0_5 = arith.constant 0 : index
    %c0_6 = arith.constant 0 : index
    %8 = vector.load %arg4[%c0_5, %c0_6] : memref<128x128xbf16, #tpu.memory_space<vmem>>, vector<128x128xbf16>
    %cst_7 = arith.constant dense<0.000000e+00> : vector<16x128xf32>
    %9 = tpu.matmul %7, %8, %cst_7 {dimension_numbers = #tpu.dot_dimension_numbers<[1], [0], [0], [1], [0, 0, 1, 1], [], []>} : vector<16x128xbf16>, vector<128x128xbf16>, vector<16x128xf32> -> vector<16x128xf32>
    %c0_8 = arith.constant 0 : index
    %c0_9 = arith.constant 0 : index
    %10 = vector.load %arg5[%c0_8, %c0_9] : memref<128x128xbf16, #tpu.memory_space<vmem>>, vector<128x128xbf16>
    %cst_10 = arith.constant dense<0.000000e+00> : vector<16x128xf32>
    %11 = tpu.matmul %2, %10, %cst_10 {dimension_numbers = #tpu.dot_dimension_numbers<[1], [0], [0], [1], [0, 0, 1, 1], [], []>} : vector<16x128xbf16>, vector<128x128xbf16>, vector<16x128xf32> -> vector<16x128xf32>
    %12 = arith.addf %9, %11 : vector<16x128xf32>
    %c0_11 = arith.constant 0 : index
    %c0_12 = arith.constant 0 : index
    %13 = vector.load %arg6[%c0_11, %c0_12] : memref<1x128xf32, #tpu.memory_space<vmem>>, vector<1x128xf32>
    %14 = vector.broadcast %13 : vector<1x128xf32> to vector<16x128xf32>
    %15 = arith.addf %12, %14 : vector<16x128xf32>
    %cst_13 = arith.constant 0.000000e+00 : f32
    %16 = vector.broadcast %cst_13 : f32 to vector<16x128xf32>
    %17 = arith.maximumf %15, %16 : vector<16x128xf32>
    %18 = arith.truncf %17 : vector<16x128xf32> to vector<16x128xbf16>
    %c0_14 = arith.constant 0 : index
    %c0_15 = arith.constant 0 : index
    %19 = vector.load %arg7[%c0_14, %c0_15] : memref<128x128xbf16, #tpu.memory_space<vmem>>, vector<128x128xbf16>
    %cst_16 = arith.constant dense<0.000000e+00> : vector<16x128xf32>
    %20 = tpu.matmul %18, %19, %cst_16 {dimension_numbers = #tpu.dot_dimension_numbers<[1], [0], [0], [1], [0, 0, 1, 1], [], []>} : vector<16x128xbf16>, vector<128x128xbf16>, vector<16x128xf32> -> vector<16x128xf32>
    %21 = arith.truncf %20 : vector<16x128xf32> to vector<16x128xbf16>
    %cst_17 = arith.constant dense<0.000000e+00> : vector<16x128xf32>
    %22 = tpu.matmul %1, %21, %cst_17 {dimension_numbers = #tpu.dot_dimension_numbers<[1], [0], [0], [1], [0, 0, 1, 1], [], []>} : vector<16x16xbf16>, vector<16x128xbf16>, vector<16x128xf32> -> vector<16x128xf32>
    %23 = vector.broadcast %3 : vector<16x1xf32> to vector<16x128xf32>
    %24 = arith.mulf %22, %23 : vector<16x128xf32>
    %c0_18 = arith.constant 0 : index
    %c0_19 = arith.constant 0 : index
    %25 = vector.load %arg8[%c0_18, %c0_19] : memref<128x128xbf16, #tpu.memory_space<vmem>>, vector<128x128xbf16>
    %cst_20 = arith.constant dense<0.000000e+00> : vector<16x128xf32>
    %26 = tpu.matmul %18, %25, %cst_20 {dimension_numbers = #tpu.dot_dimension_numbers<[1], [0], [0], [1], [0, 0, 1, 1], [], []>} : vector<16x128xbf16>, vector<128x128xbf16>, vector<16x128xf32> -> vector<16x128xf32>
    %27 = arith.addf %24, %26 : vector<16x128xf32>
    %c0_21 = arith.constant 0 : index
    %c0_22 = arith.constant 0 : index
    %28 = vector.load %arg9[%c0_21, %c0_22] : memref<1x128xf32, #tpu.memory_space<vmem>>, vector<1x128xf32>
    %29 = vector.broadcast %28 : vector<1x128xf32> to vector<16x128xf32>
    %30 = arith.addf %27, %29 : vector<16x128xf32>
    %c0_23 = arith.constant 0 : index
    %c0_24 = arith.constant 0 : index
    %31 = vector.load %arg10[%c0_23, %c0_24] : memref<16x128xf32, #tpu.memory_space<vmem>>, vector<16x128xf32>
    tpu.vector_store %arg10[%c0_23, %c0_24], %30 {strides = array<i32>} : memref<16x128xf32, #tpu.memory_space<vmem>>, vector<16x128xf32>,
    return
  }
  func.func @transform_0(%arg0: i32) -> (i32, i32) {
    %c0_i32 = arith.constant 0 : i32
    %c0_i32_0 = arith.constant 0 : i32
    %c0_i32_1 = arith.constant 0 : i32
    return %c0_i32, %c0_i32_0 : i32, i32
  }
  func.func @transform_1(%arg0: i32) -> (i32, i32) {
    %c0_i32 = arith.constant 0 : i32
    %c0_i32_0 = arith.constant 0 : i32
    %c0_i32_1 = arith.constant 0 : i32
    return %c0_i32, %c0_i32_0 : i32, i32
  }
  func.func @transform_2(%arg0: i32) -> (i32, i32) {
    %c0_i32 = arith.constant 0 : i32
    %c0_i32_0 = arith.constant 0 : i32
    %c0_i32_1 = arith.constant 0 : i32
    return %c0_i32, %c0_i32_0 : i32, i32
  }
  func.func @transform_3(%arg0: i32) -> (i32, i32) {
    %c0_i32 = arith.constant 0 : i32
    %c0_i32_0 = arith.constant 0 : i32
    %c0_i32_1 = arith.constant 0 : i32
    return %c0_i32, %c0_i32_0 : i32, i32
  }
  func.func @transform_4(%arg0: i32) -> (i32, i32) {
    %c0_i32 = arith.constant 0 : i32
    %c0_i32_0 = arith.constant 0 : i32
    %c0_i32_1 = arith.constant 0 : i32
    return %c0_i32, %c0_i32_0 : i32, i32
  }
  func.func @transform_5(%arg0: i32) -> (i32, i32) {
    %c0_i32 = arith.constant 0 : i32
    %c0_i32_0 = arith.constant 0 : i32
    %c0_i32_1 = arith.constant 0 : i32
    return %c0_i32, %c0_i32_0 : i32, i32
  }
  func.func @transform_6(%arg0: i32) -> (i32, i32) {
    %c0_i32 = arith.constant 0 : i32
    %c0_i32_0 = arith.constant 0 : i32
    %c0_i32_1 = arith.constant 0 : i32
    return %c0_i32, %c0_i32_0 : i32, i32
  }
  func.func @transform_7(%arg0: i32) -> (i32, i32) {
    %c0_i32 = arith.constant 0 : i32
    %c0_i32_0 = arith.constant 0 : i32
    %c0_i32_1 = arith.constant 0 : i32
    return %c0_i32, %c0_i32_0 : i32, i32
  }
  func.func @transform_8(%arg0: i32) -> (i32, i32) {
    %c0_i32 = arith.constant 0 : i32
    %c0_i32_0 = arith.constant 0 : i32
    %c0_i32_1 = arith.constant 0 : i32
    return %c0_i32, %c0_i32_0 : i32, i32
  }
  func.func @transform_9(%arg0: i32) -> (i32, i32) {
    %c0_i32 = arith.constant 0 : i32
    %c0_i32_0 = arith.constant 0 : i32
    %c0_i32_1 = arith.constant 0 : i32
    return %c0_i32, %c0_i32_0 : i32, i32
  }
}

</mosaic_0001>

<llo_original>
// kernel: tpu_custom_call.1
$region0: #{tpu_custom_call.1}
  #allocation0 [shape = 'u32[]', space=smem, size = 0x4, offset = 0x4, fixed_abs, tag = 'smem constant byte address 0x4 - core index']
  #allocation1 [shape = 'u32[144,128]{1,0:T(1,128)}', space=vmem, size = 0x12000, scoped, tag = 'internal scratch']
  %s0 = inlined_call_operand.vmem [shape: s8[16,16], index: 0, kind: input, shape index: {}]
  %s1 = inlined_call_operand.vmem [shape: f32[16,1], index: 1, kind: input, shape index: {}]
  %s2 = inlined_call_operand.vmem [shape: bf16[16,128], index: 2, kind: input, shape index: {}]
  %s3 = inlined_call_operand.hbm [shape: bf16[128,128], index: 3, kind: input, shape index: {}]
  %s4 = inlined_call_operand.hbm [shape: bf16[128,128], index: 4, kind: input, shape index: {}]
  %s5 = inlined_call_operand.vmem [shape: f32[1,128], index: 5, kind: input, shape index: {}]
  %s6 = inlined_call_operand.hbm [shape: bf16[128,128], index: 6, kind: input, shape index: {}]
  %s7 = inlined_call_operand.hbm [shape: bf16[128,128], index: 7, kind: input, shape index: {}]
  %s8 = inlined_call_operand.vmem [shape: f32[1,128], index: 8, kind: input, shape index: {}]
  %s9 = inlined_call_operand.hbm [shape: f32[16,128], index: 9, kind: output, shape index: {}]
  %s10 = sld [smem:[#allocation0]]
  $region62: #{tpu_custom_call.1} parent=0
    _
  %s12 = ssub.s32 1, %s10
  %s13 = scalar_select 0, %s12, %s10
  $region1: #{tpu_custom_call.1} parent=0
    #allocation2 [shape = 'u8[32768]{0}', space=vmem, size = 0x8000, scoped, tag = 'input window, operand 3, single buffered']
    #allocation3 [shape = 's32[1]{0}', space=sflag, size = 0x4, scoped, tag = 'scoped memory for tpu_custom_call.1']
    #allocation4 [shape = 's32[1]{0}', space=sflag, size = 0x4, scoped, tag = 'scoped memory for tpu_custom_call.1']
    #allocation5 [shape = 'u8[32768]{0}', space=vmem, size = 0x8000, scoped, tag = 'input window, operand 4, single buffered']
    #allocation6 [shape = 's32[1]{0}', space=sflag, size = 0x4, scoped, tag = 'scoped memory for tpu_custom_call.1']
    #allocation7 [shape = 'u8[32768]{0}', space=vmem, size = 0x8000, scoped, tag = 'input window, operand 6, single buffered']
    #allocation8 [shape = 'u8[32768]{0}', space=vmem, size = 0x8000, scoped, tag = 'input window, operand 7, single buffered']
    #allocation9 [shape = 's32[1]{0}', space=sflag, size = 0x4, scoped, tag = 'scoped memory for tpu_custom_call.1']
    #allocation10 [shape = 'u8[8192]{0}', space=vmem, size = 0x2000, scoped, tag = 'output window, operand 0, single buffered']
    %14 = vsyncpa [#allocation3], 0
    %15 = vsyncpa [#allocation6], 0
    %16 = vsyncpa [#allocation9], 0
    %17 = vsyncpa [#allocation4], 0
    // Predicated region
    $region2: #{tpu_custom_call.1} parent=1 // pred_check
      _
    $region3: #{tpu_custom_call.1} parent=1 // pred_check_branch
      %19 = sbr.rel (0) target = $region5
    $region4: #{tpu_custom_call.1} parent=1 // pred_region
      _
    $region5: #{tpu_custom_call.1} parent=1 // pred_fallthru
      _
    // Predicated region
    $region6: #{tpu_custom_call.1} parent=1 // pred_check
      _
    $region7: #{tpu_custom_call.1} parent=1 // pred_check_branch
      %21 = sbr.rel (0) target = $region9
    $region8: #{tpu_custom_call.1} parent=1 // pred_region
      _
    $region9: #{tpu_custom_call.1} parent=1 // pred_fallthru
      _
    // Predicated region
    $region10: #{tpu_custom_call.1} parent=1 // pred_check
      _
    $region11: #{tpu_custom_call.1} parent=1 // pred_check_branch
      %23 = sbr.rel (0) target = $region13
    $region12: #{tpu_custom_call.1} parent=1 // pred_region
      _
    $region13: #{tpu_custom_call.1} parent=1 // pred_fallthru
      _
    // Predicated region
    $region14: #{tpu_custom_call.1} parent=1 // pred_check
      _
    $region15: #{tpu_custom_call.1} parent=1 // pred_check_branch
      %25 = sbr.rel (0) target = $region17
    $region16: #{tpu_custom_call.1} parent=1 // pred_region
      %s27 = ssub.s32 1024, 1024
      %28 = vsyncadd [#allocation3], %s27
      %s29 = sshll.u32 [#allocation2], 4
      %s30 = int_to_ptr.vmem [resolvable:$true] %s29
      %35 = dma.hbm_to_vmem [thread:$0]  %s3, 1024, %s30, [#allocation3], 64, 64, 4
    $region17: #{tpu_custom_call.1} parent=1 // pred_fallthru
      _
    // Predicated region
    $region18: #{tpu_custom_call.1} parent=1 // pred_check
      _
    $region19: #{tpu_custom_call.1} parent=1 // pred_check_branch
      %37 = sbr.rel (0) target = $region21
    $region20: #{tpu_custom_call.1} parent=1 // pred_region
      %s39 = ssub.s32 1024, 1024
      %40 = vsyncadd [#allocation6], %s39
      %s41 = sshll.u32 [#allocation5], 4
      %s42 = int_to_ptr.vmem [resolvable:$true] %s41
      %47 = dma.hbm_to_vmem [thread:$0]  %s4, 1024, %s42, [#allocation6], 64, 64, 4
    $region21: #{tpu_custom_call.1} parent=1 // pred_fallthru
      _
    // Predicated region
    $region22: #{tpu_custom_call.1} parent=1 // pred_check
      _
    $region23: #{tpu_custom_call.1} parent=1 // pred_check_branch
      %49 = sbr.rel (0) target = $region25
    $region24: #{tpu_custom_call.1} parent=1 // pred_region
      _
    $region25: #{tpu_custom_call.1} parent=1 // pred_fallthru
      _
    // Predicated region
    $region26: #{tpu_custom_call.1} parent=1 // pred_check
      _
    $region27: #{tpu_custom_call.1} parent=1 // pred_check_branch
      %51 = sbr.rel (0) target = $region29
    $region28: #{tpu_custom_call.1} parent=1 // pred_region
      %s53 = ssub.s32 1024, 1024
      %54 = vsyncadd [#allocation6], %s53
      %s55 = sshll.u32 [#allocation7], 4
      %s56 = int_to_ptr.vmem [resolvable:$true] %s55
      %61 = dma.hbm_to_vmem [thread:$0]  %s6, 1024, %s56, [#allocation6], 64, 64, 4
    $region29: #{tpu_custom_call.1} parent=1 // pred_fallthru
      _
    // Predicated region
    $region30: #{tpu_custom_call.1} parent=1 // pred_check
      _
    $region31: #{tpu_custom_call.1} parent=1 // pred_check_branch
      %63 = sbr.rel (0) target = $region33
    $region32: #{tpu_custom_call.1} parent=1 // pred_region
      %s65 = ssub.s32 1024, 1024
      %66 = vsyncadd [#allocation9], %s65
      %s67 = sshll.u32 [#allocation8], 4
      %s68 = int_to_ptr.vmem [resolvable:$true] %s67
      %73 = dma.hbm_to_vmem [thread:$0]  %s7, 1024, %s68, [#allocation9], 64, 64, 4
    $region33: #{tpu_custom_call.1} parent=1 // pred_fallthru
      _
    // Predicated region
    $region34: #{tpu_custom_call.1} parent=1 // pred_check
      _
    $region35: #{tpu_custom_call.1} parent=1 // pred_check_branch
      %75 = sbr.rel (0) target = $region37
    $region36: #{tpu_custom_call.1} parent=1 // pred_region
      _
    $region37: #{tpu_custom_call.1} parent=1 // pred_fallthru
      _
    // Predicated region
    $region38: #{tpu_custom_call.1} parent=1 // pred_check
      _
    $region39: #{tpu_custom_call.1} parent=1 // pred_check_branch
      %77 = sbr.rel (0) target = $region41
    $region40: #{tpu_custom_call.1} parent=1 // pred_region
      %78 = dma.done [#allocation3], 1024
    $region41: #{tpu_custom_call.1} parent=1 // pred_fallthru
      _
    // Predicated region
    $region42: #{tpu_custom_call.1} parent=1 // pred_check
      _
    $region43: #{tpu_custom_call.1} parent=1 // pred_check_branch
      %80 = sbr.rel (0) target = $region45
    $region44: #{tpu_custom_call.1} parent=1 // pred_region
      %81 = dma.done [#allocation6], 1024
    $region45: #{tpu_custom_call.1} parent=1 // pred_fallthru
      _
    // Predicated region
    $region46: #{tpu_custom_call.1} parent=1 // pred_check
      _
    $region47: #{tpu_custom_call.1} parent=1 // pred_check_branch
      %83 = sbr.rel (0) target = $region49
    $region48: #{tpu_custom_call.1} parent=1 // pred_region
      %84 = dma.done [#allocation6], 1024
    $region49: #{tpu_custom_call.1} parent=1 // pred_fallthru
      _
    // Predicated region
    $region50: #{tpu_custom_call.1} parent=1 // pred_check
      _
    $region51: #{tpu_custom_call.1} parent=1 // pred_check_branch
      %86 = sbr.rel (0) target = $region53
    $region52: #{tpu_custom_call.1} parent=1 // pred_region
      %87 = dma.done [#allocation9], 1024
    $region53: #{tpu_custom_call.1} parent=1 // pred_fallthru
      _
    %v89 = vld [vmem:[%s0] sm:$0x3]
    %v90 = vld [vmem:[%s0 + $0x2] sm:$0x3]
    %v91 = vunpack.c.l.s8.bf16 %v89
    %v92 = vunpack.c.l.s8.bf16 %v90
    %v93 = vld [vmem:[%s2] sm:$0xf]
    %v94 = vld [vmem:[%s2 + $0x4] sm:$0xf]
    %v95 = vld [vmem:[%s1] sm:$0xff]
    %v96 = vld [vmem:[%s1 + $0x8] sm:$0xff]
    %v99 = vunpack.c.l.b16 %v91
    %v100 = vunpack.c.l.b16 %v92
    %v101 = vpack.c.b16 %v100, %v99
    %v104 = vunpack.c.l.b16 %v93
    %v105 = vunpack.c.l.b16 %v94
    %v106 = vpack.c.b16 %v105, %v104
    %vm108 = vcmask 130048
    %v110 = vsel %vm108, %v101, 0
    %112 = vmatprep.subr.bf16.mxu0 0
    %113 = vmatpush1.bf16.msra.mxu0 %v106
    %114 = vmatprep.subr.bf16.mxu0 0
    %115 = vmatpush1.bf16.msra.mxu0 0
    %116 = vmatprep.subr.bf16.mxu0 0
    %117 = vmatpush1.bf16.msra.mxu0 0
    %118 = vmatprep.subr.bf16.mxu0 0
    %119 = vmatpush1.bf16.msra.mxu0 0
    %120 = vmatprep.subr.bf16.mxu0 0
    %121 = vmatpush1.bf16.msra.mxu0 0
    %122 = vmatprep.subr.bf16.mxu0 0
    %123 = vmatpush1.bf16.msra.mxu0 0
    %124 = vmatprep.subr.bf16.mxu0 0
    %125 = vmatpush1.bf16.msra.mxu0 0
    %126 = vmatprep.subr.bf16.mxu0 0
    %127 = vmatpush1.bf16.msra.mxu0 0
    %128 = vmatprep.subr.bf16.mxu0 0
    %129 = vmatpush1.bf16.msra.mxu0 0
    %130 = vmatprep.subr.bf16.mxu0 0
    %131 = vmatpush1.bf16.msra.mxu0 0
    %132 = vmatprep.subr.bf16.mxu0 0
    %133 = vmatpush1.bf16.msra.mxu0 0
    %134 = vmatprep.subr.bf16.mxu0 0
    %135 = vmatpush1.bf16.msra.mxu0 0
    %136 = vmatprep.subr.bf16.mxu0 0
    %137 = vmatpush1.bf16.msra.mxu0 0
    %138 = vmatprep.subr.bf16.mxu0 0
    %139 = vmatpush1.bf16.msra.mxu0 0
    %140 = vmatprep.subr.bf16.mxu0 0
    %141 = vmatpush1.bf16.msra.mxu0 0
    %142 = vmatprep.subr.bf16.mxu0 0
    %143 = vmatpush1.bf16.msra.mxu0 0
    %144 = vmatprep.mubr.bf16.mxu0 0
    %145 = vmatmul.mubr.bf16.gmra.mrb[0].mxu0 %v110
    %v146 = vpop.f32.mrb[0].mxu0
    %v147 = vadd.f32 0.0, %v146
    %v148 = vpop.f32.mrb[0].mxu0
    %v149 = vpop.f32.mrb[0].mxu0
    %v150 = vadd.f32 0.0, %v149
    %v151 = vpop.f32.mrb[0].mxu0
    %152 = vdwg.mxu0
    %154 = vset.pattern.permute.xlu0 0
    %155 = vperm.xlu0 %154, %v95
    %v156 = vpop.permute.xlu0 %155
    %159 = vset.pattern.permute.xlu0 0
    %160 = vperm.xlu0 %159, %v96
    %v161 = vpop.permute.xlu0 %160
    %v163 = vmul.f32 %v147, %v156
    %v164 = vmul.f32 %v150, %v161
    %v165 = vpack.c.bf16 %v164, %v163
    %v166 = vld [vmem:[#allocation2] sm:$0xf]
    %v167 = vld [vmem:[#allocation2 + $0x4] sm:$0xf]
    %v168 = vld [vmem:[#allocation2 + $0x8] sm:$0xf]
    %v169 = vld [vmem:[#allocation2 + $0xc] sm:$0xf]
    %v170 = vld [vmem:[#allocation2 + $0x10] sm:$0xf]
    %v171 = vld [vmem:[#allocation2 + $0x14] sm:$0xf]
    %v172 = vld [vmem:[#allocation2 + $0x18] sm:$0xf]
    %v173 = vld [vmem:[#allocation2 + $0x1c] sm:$0xf]
    %v174 = vld [vmem:[#allocation2 + $0x20] sm:$0xf]
    %v175 = vld [vmem:[#allocation2 + $0x24] sm:$0xf]
    %v176 = vld [vmem:[#allocation2 + $0x28] sm:$0xf]
    %v177 = vld [vmem:[#allocation2 + $0x2c] sm:$0xf]
    %v178 = vld [vmem:[#allocation2 + $0x30] sm:$0xf]
    %v179 = vld [vmem:[#allocation2 + $0x34] sm:$0xf]
    %v180 = vld [vmem:[#allocation2 + $0x38] sm:$0xf]
    %v181 = vld [vmem:[#allocation2 + $0x3c] sm:$0xf]
    %v182 = vld [vmem:[#allocation5] sm:$0xf]
    %v183 = vld [vmem:[#allocation5 + $0x4] sm:$0xf]
    %v184 = vld [vmem:[#allocation5 + $0x8] sm:$0xf]
    %v185 = vld [vmem:[#allocation5 + $0xc] sm:$0xf]
    %v186 = vld [vmem:[#allocation5 + $0x10] sm:$0xf]
    %v187 = vld [vmem:[#allocation5 + $0x14] sm:$0xf]
    %v188 = vld [vmem:[#allocation5 + $0x18] sm:$0xf]
    %v189 = vld [vmem:[#allocation5 + $0x1c] sm:$0xf]
    %v190 = vld [vmem:[#allocation5 + $0x20] sm:$0xf]
    %v191 = vld [vmem:[#allocation5 + $0x24] sm:$0xf]
    %v192 = vld [vmem:[#allocation5 + $0x28] sm:$0xf]
    %v193 = vld [vmem:[#allocation5 + $0x2c] sm:$0xf]
    %v194 = vld [vmem:[#allocation5 + $0x30] sm:$0xf]
    %v195 = vld [vmem:[#allocation5 + $0x34] sm:$0xf]
    %v196 = vld [vmem:[#allocation5 + $0x38] sm:$0xf]
    %v197 = vld [vmem:[#allocation5 + $0x3c] sm:$0xf]
    %v214 = vunpack.c.l.b16 %v182
    %v215 = vunpack.c.l.b16 %v183
    %v216 = vunpack.c.l.b16 %v184
    %v217 = vunpack.c.l.b16 %v185
    %v218 = vunpack.c.l.b16 %v186
    %v219 = vunpack.c.l.b16 %v187
    %v220 = vunpack.c.l.b16 %v188
    %v221 = vunpack.c.l.b16 %v189
    %v222 = vunpack.c.l.b16 %v190
    %v223 = vunpack.c.l.b16 %v191
    %v224 = vunpack.c.l.b16 %v192
    %v225 = vunpack.c.l.b16 %v193
    %v226 = vunpack.c.l.b16 %v194
    %v227 = vunpack.c.l.b16 %v195
    %v228 = vunpack.c.l.b16 %v196
    %v229 = vunpack.c.l.b16 %v197
    %v230 = vpack.c.b16 %v215, %v214
    %v231 = vpack.c.b16 %v217, %v216
    %v232 = vpack.c.b16 %v219, %v218
    %v233 = vpack.c.b16 %v221, %v220
    %v234 = vpack.c.b16 %v223, %v222
    %v235 = vpack.c.b16 %v225, %v224
    %v236 = vpack.c.b16 %v227, %v226
    %v237 = vpack.c.b16 %v229, %v228
    %246 = vmatprep.subr.bf16.mxu0 0
    %247 = vmatpush1.bf16.msra.mxu0 %v230
    %248 = vmatprep.subr.bf16.mxu0 0
    %249 = vmatpush1.bf16.msra.mxu0 %v231
    %250 = vmatprep.subr.bf16.mxu0 0
    %251 = vmatpush1.bf16.msra.mxu0 %v232
    %252 = vmatprep.subr.bf16.mxu0 0
    %253 = vmatpush1.bf16.msra.mxu0 %v233
    %254 = vmatprep.subr.bf16.mxu0 0
    %255 = vmatpush1.bf16.msra.mxu0 %v234
    %256 = vmatprep.subr.bf16.mxu0 0
    %257 = vmatpush1.bf16.msra.mxu0 %v235
    %258 = vmatprep.subr.bf16.mxu0 0
    %259 = vmatpush1.bf16.msra.mxu0 %v236
    %260 = vmatprep.subr.bf16.mxu0 0
    %261 = vmatpush1.bf16.msra.mxu0 %v237
    %262 = vmatprep.subr.bf16.mxu0 0
    %263 = vmatpush1.bf16.msra.mxu0 0
    %264 = vmatprep.subr.bf16.mxu0 0
    %265 = vmatpush1.bf16.msra.mxu0 0
    %266 = vmatprep.subr.bf16.mxu0 0
    %267 = vmatpush1.bf16.msra.mxu0 0
    %268 = vmatprep.subr.bf16.mxu0 0
    %269 = vmatpush1.bf16.msra.mxu0 0
    %270 = vmatprep.subr.bf16.mxu0 0
    %271 = vmatpush1.bf16.msra.mxu0 0
    %272 = vmatprep.subr.bf16.mxu0 0
    %273 = vmatpush1.bf16.msra.mxu0 0
    %274 = vmatprep.subr.bf16.mxu0 0
    %275 = vmatpush1.bf16.msra.mxu0 0
    %276 = vmatprep.subr.bf16.mxu0 0
    %277 = vmatpush1.bf16.msra.mxu0 0
    %278 = vmatprep.mubr.bf16.mxu0 0
    %279 = vmatmul.mubr.bf16.gmra.mrb[0].mxu0 %v106
    %v280 = vpop.f32.mrb[0].mxu0
    %v281 = vadd.f32 0.0, %v280
    %v282 = vpop.f32.mrb[0].mxu0
    %v283 = vpop.f32.mrb[0].mxu0
    %v284 = vadd.f32 0.0, %v283
    %v285 = vpop.f32.mrb[0].mxu0
    %286 = vdwg.mxu0
    %v303 = vunpack.c.l.b16 %v166
    %v304 = vunpack.c.l.b16 %v167
    %v305 = vunpack.c.l.b16 %v168
    %v306 = vunpack.c.l.b16 %v169
    %v307 = vunpack.c.l.b16 %v170
    %v308 = vunpack.c.l.b16 %v171
    %v309 = vunpack.c.l.b16 %v172
    %v310 = vunpack.c.l.b16 %v173
    %v311 = vunpack.c.l.b16 %v174
    %v312 = vunpack.c.l.b16 %v175
    %v313 = vunpack.c.l.b16 %v176
    %v314 = vunpack.c.l.b16 %v177
    %v315 = vunpack.c.l.b16 %v178
    %v316 = vunpack.c.l.b16 %v179
    %v317 = vunpack.c.l.b16 %v180
    %v318 = vunpack.c.l.b16 %v181
    %v319 = vpack.c.b16 %v304, %v303
    %v320 = vpack.c.b16 %v306, %v305
    %v321 = vpack.c.b16 %v308, %v307
    %v322 = vpack.c.b16 %v310, %v309
    %v323 = vpack.c.b16 %v312, %v311
    %v324 = vpack.c.b16 %v314, %v313
    %v325 = vpack.c.b16 %v316, %v315
    %v326 = vpack.c.b16 %v318, %v317
    %335 = vmatprep.subr.bf16.mxu0 0
    %336 = vmatpush1.bf16.msra.mxu0 %v319
    %337 = vmatprep.subr.bf16.mxu0 0
    %338 = vmatpush1.bf16.msra.mxu0 %v320
    %339 = vmatprep.subr.bf16.mxu0 0
    %340 = vmatpush1.bf16.msra.mxu0 %v321
    %341 = vmatprep.subr.bf16.mxu0 0
    %342 = vmatpush1.bf16.msra.mxu0 %v322
    %343 = vmatprep.subr.bf16.mxu0 0
    %344 = vmatpush1.bf16.msra.mxu0 %v323
    %345 = vmatprep.subr.bf16.mxu0 0
    %346 = vmatpush1.bf16.msra.mxu0 %v324
    %347 = vmatprep.subr.bf16.mxu0 0
    %348 = vmatpush1.bf16.msra.mxu0 %v325
    %349 = vmatprep.subr.bf16.mxu0 0
    %350 = vmatpush1.bf16.msra.mxu0 %v326
    %351 = vmatprep.subr.bf16.mxu0 0
    %352 = vmatpush1.bf16.msra.mxu0 0
    %353 = vmatprep.subr.bf16.mxu0 0
    %354 = vmatpush1.bf16.msra.mxu0 0
    %355 = vmatprep.subr.bf16.mxu0 0
    %356 = vmatpush1.bf16.msra.mxu0 0
    %357 = vmatprep.subr.bf16.mxu0 0
    %358 = vmatpush1.bf16.msra.mxu0 0
    %359 = vmatprep.subr.bf16.mxu0 0
    %360 = vmatpush1.bf16.msra.mxu0 0
    %361 = vmatprep.subr.bf16.mxu0 0
    %362 = vmatpush1.bf16.msra.mxu0 0
    %363 = vmatprep.subr.bf16.mxu0 0
    %364 = vmatpush1.bf16.msra.mxu0 0
    %365 = vmatprep.subr.bf16.mxu0 0
    %366 = vmatpush1.bf16.msra.mxu0 0
    %367 = vmatprep.mubr.bf16.mxu0 0
    %368 = vmatmul.mubr.bf16.gmra.mrb[0].mxu0 %v165
    %v369 = vpop.f32.mrb[0].mxu0
    %v370 = vadd.f32 %v281, %v369
    %v371 = vpop.f32.mrb[0].mxu0
    %v372 = vpop.f32.mrb[0].mxu0
    %v373 = vadd.f32 %v284, %v372
    %v374 = vpop.f32.mrb[0].mxu0
    %375 = vdwg.mxu0
    %v376 = vld [vmem:[%s5] sm:$0x1]
    %v378 = vlaneseq
    %v379 = vshrl.u32 %v378, 7
    %v380 = vsub.s32 0, %v379
    %v381 = vrot.slane %v376, %v380
    %v383 = vadd.f32 %v370, %v381
    %v384 = vadd.f32 %v373, %v381
    %v385 = vmax.f32 %v383, 0.0
    %v386 = vmax.f32 %v384, 0.0
    %v387 = vpack.c.bf16 %v386, %v385
    %v388 = vld [vmem:[#allocation7] sm:$0xf]
    %v389 = vld [vmem:[#allocation7 + $0x4] sm:$0xf]
    %v390 = vld [vmem:[#allocation7 + $0x8] sm:$0xf]
    %v391 = vld [vmem:[#allocation7 + $0xc] sm:$0xf]
    %v392 = vld [vmem:[#allocation7 + $0x10] sm:$0xf]
    %v393 = vld [vmem:[#allocation7 + $0x14] sm:$0xf]
    %v394 = vld [vmem:[#allocation7 + $0x18] sm:$0xf]
    %v395 = vld [vmem:[#allocation7 + $0x1c] sm:$0xf]
    %v396 = vld [vmem:[#allocation7 + $0x20] sm:$0xf]
    %v397 = vld [vmem:[#allocation7 + $0x24] sm:$0xf]
    %v398 = vld [vmem:[#allocation7 + $0x28] sm:$0xf]
    %v399 = vld [vmem:[#allocation7 + $0x2c] sm:$0xf]
    %v400 = vld [vmem:[#allocation7 + $0x30] sm:$0xf]
    %v401 = vld [vmem:[#allocation7 + $0x34] sm:$0xf]
    %v402 = vld [vmem:[#allocation7 + $0x38] sm:$0xf]
    %v403 = vld [vmem:[#allocation7 + $0x3c] sm:$0xf]
    %v420 = vunpack.c.l.b16 %v388
    %v421 = vunpack.c.l.b16 %v389
    %v422 = vunpack.c.l.b16 %v390
    %v423 = vunpack.c.l.b16 %v391
    %v424 = vunpack.c.l.b16 %v392
    %v425 = vunpack.c.l.b16 %v393
    %v426 = vunpack.c.l.b16 %v394
    %v427 = vunpack.c.l.b16 %v395
    %v428 = vunpack.c.l.b16 %v396
    %v429 = vunpack.c.l.b16 %v397
    %v430 = vunpack.c.l.b16 %v398
    %v431 = vunpack.c.l.b16 %v399
    %v432 = vunpack.c.l.b16 %v400
    %v433 = vunpack.c.l.b16 %v401
    %v434 = vunpack.c.l.b16 %v402
    %v435 = vunpack.c.l.b16 %v403
    %v436 = vpack.c.b16 %v421, %v420
    %v437 = vpack.c.b16 %v423, %v422
    %v438 = vpack.c.b16 %v425, %v424
    %v439 = vpack.c.b16 %v427, %v426
    %v440 = vpack.c.b16 %v429, %v428
    %v441 = vpack.c.b16 %v431, %v430
    %v442 = vpack.c.b16 %v433, %v432
    %v443 = vpack.c.b16 %v435, %v434
    %452 = vmatprep.subr.bf16.mxu0 0
    %453 = vmatpush1.bf16.msra.mxu0 %v436
    %454 = vmatprep.subr.bf16.mxu0 0
    %455 = vmatpush1.bf16.msra.mxu0 %v437
    %456 = vmatprep.subr.bf16.mxu0 0
    %457 = vmatpush1.bf16.msra.mxu0 %v438
    %458 = vmatprep.subr.bf16.mxu0 0
    %459 = vmatpush1.bf16.msra.mxu0 %v439
    %460 = vmatprep.subr.bf16.mxu0 0
    %461 = vmatpush1.bf16.msra.mxu0 %v440
    %462 = vmatprep.subr.bf16.mxu0 0
    %463 = vmatpush1.bf16.msra.mxu0 %v441
    %464 = vmatprep.subr.bf16.mxu0 0
    %465 = vmatpush1.bf16.msra.mxu0 %v442
    %466 = vmatprep.subr.bf16.mxu0 0
    %467 = vmatpush1.bf16.msra.mxu0 %v443
    %468 = vmatprep.subr.bf16.mxu0 0
    %469 = vmatpush1.bf16.msra.mxu0 0
    %470 = vmatprep.subr.bf16.mxu0 0
    %471 = vmatpush1.bf16.msra.mxu0 0
    %472 = vmatprep.subr.bf16.mxu0 0
    %473 = vmatpush1.bf16.msra.mxu0 0
    %474 = vmatprep.subr.bf16.mxu0 0
    %475 = vmatpush1.bf16.msra.mxu0 0
    %476 = vmatprep.subr.bf16.mxu0 0
    %477 = vmatpush1.bf16.msra.mxu0 0
    %478 = vmatprep.subr.bf16.mxu0 0
    %479 = vmatpush1.bf16.msra.mxu0 0
    %480 = vmatprep.subr.bf16.mxu0 0
    %481 = vmatpush1.bf16.msra.mxu0 0
    %482 = vmatprep.subr.bf16.mxu0 0
    %483 = vmatpush1.bf16.msra.mxu0 0
    %484 = vmatprep.mubr.bf16.mxu0 0
    %485 = vmatmul.mubr.bf16.gmra.mrb[0].mxu0 %v387
    %v486 = vpop.f32.mrb[0].mxu0
    %v487 = vadd.f32 0.0, %v486
    %v488 = vpop.f32.mrb[0].mxu0
    %v489 = vpop.f32.mrb[0].mxu0
    %v490 = vadd.f32 0.0, %v489
    %v491 = vpop.f32.mrb[0].mxu0
    %492 = vdwg.mxu0
    %v493 = vpack.c.bf16 %v490, %v487
    %494 = vmatprep.subr.bf16.mxu0 0
    %495 = vmatpush1.bf16.msra.mxu0 %v493
    %496 = vmatprep.subr.bf16.mxu0 0
    %497 = vmatpush1.bf16.msra.mxu0 0
    %498 = vmatprep.subr.bf16.mxu0 0
    %499 = vmatpush1.bf16.msra.mxu0 0
    %500 = vmatprep.subr.bf16.mxu0 0
    %501 = vmatpush1.bf16.msra.mxu0 0
    %502 = vmatprep.subr.bf16.mxu0 0
    %503 = vmatpush1.bf16.msra.mxu0 0
    %504 = vmatprep.subr.bf16.mxu0 0
    %505 = vmatpush1.bf16.msra.mxu0 0
    %506 = vmatprep.subr.bf16.mxu0 0
    %507 = vmatpush1.bf16.msra.mxu0 0
    %508 = vmatprep.subr.bf16.mxu0 0
    %509 = vmatpush1.bf16.msra.mxu0 0
    %510 = vmatprep.subr.bf16.mxu0 0
    %511 = vmatpush1.bf16.msra.mxu0 0
    %512 = vmatprep.subr.bf16.mxu0 0
    %513 = vmatpush1.bf16.msra.mxu0 0
    %514 = vmatprep.subr.bf16.mxu0 0
    %515 = vmatpush1.bf16.msra.mxu0 0
    %516 = vmatprep.subr.bf16.mxu0 0
    %517 = vmatpush1.bf16.msra.mxu0 0
    %518 = vmatprep.subr.bf16.mxu0 0
    %519 = vmatpush1.bf16.msra.mxu0 0
    %520 = vmatprep.subr.bf16.mxu0 0
    %521 = vmatpush1.bf16.msra.mxu0 0
    %522 = vmatprep.subr.bf16.mxu0 0
    %523 = vmatpush1.bf16.msra.mxu0 0
    %524 = vmatprep.subr.bf16.mxu0 0
    %525 = vmatpush1.bf16.msra.mxu0 0
    %526 = vmatprep.mubr.bf16.mxu0 0
    %527 = vmatmul.mubr.bf16.gmra.mrb[0].mxu0 %v110
    %v528 = vpop.f32.mrb[0].mxu0
    %v529 = vadd.f32 0.0, %v528
    %v530 = vpop.f32.mrb[0].mxu0
    %v531 = vpop.f32.mrb[0].mxu0
    %v532 = vadd.f32 0.0, %v531
    %v533 = vpop.f32.mrb[0].mxu0
    %534 = vdwg.mxu0
    %v535 = vmul.f32 %v529, %v156
    %v536 = vmul.f32 %v532, %v161
    %v537 = vld [vmem:[#allocation8] sm:$0xf]
    %v538 = vld [vmem:[#allocation8 + $0x4] sm:$0xf]
    %v539 = vld [vmem:[#allocation8 + $0x8] sm:$0xf]
    %v540 = vld [vmem:[#allocation8 + $0xc] sm:$0xf]
    %v541 = vld [vmem:[#allocation8 + $0x10] sm:$0xf]
    %v542 = vld [vmem:[#allocation8 + $0x14] sm:$0xf]
    %v543 = vld [vmem:[#allocation8 + $0x18] sm:$0xf]
    %v544 = vld [vmem:[#allocation8 + $0x1c] sm:$0xf]
    %v545 = vld [vmem:[#allocation8 + $0x20] sm:$0xf]
    %v546 = vld [vmem:[#allocation8 + $0x24] sm:$0xf]
    %v547 = vld [vmem:[#allocation8 + $0x28] sm:$0xf]
    %v548 = vld [vmem:[#allocation8 + $0x2c] sm:$0xf]
    %v549 = vld [vmem:[#allocation8 + $0x30] sm:$0xf]
    %v550 = vld [vmem:[#allocation8 + $0x34] sm:$0xf]
    %v551 = vld [vmem:[#allocation8 + $0x38] sm:$0xf]
    %v552 = vld [vmem:[#allocation8 + $0x3c] sm:$0xf]
    %v569 = vunpack.c.l.b16 %v537
    %v570 = vunpack.c.l.b16 %v538
    %v571 = vunpack.c.l.b16 %v539
    %v572 = vunpack.c.l.b16 %v540
    %v573 = vunpack.c.l.b16 %v541
    %v574 = vunpack.c.l.b16 %v542
    %v575 = vunpack.c.l.b16 %v543
    %v576 = vunpack.c.l.b16 %v544
    %v577 = vunpack.c.l.b16 %v545
    %v578 = vunpack.c.l.b16 %v546
    %v579 = vunpack.c.l.b16 %v547
    %v580 = vunpack.c.l.b16 %v548
    %v581 = vunpack.c.l.b16 %v549
    %v582 = vunpack.c.l.b16 %v550
    %v583 = vunpack.c.l.b16 %v551
    %v584 = vunpack.c.l.b16 %v552
    %v585 = vpack.c.b16 %v570, %v569
    %v586 = vpack.c.b16 %v572, %v571
    %v587 = vpack.c.b16 %v574, %v573
    %v588 = vpack.c.b16 %v576, %v575
    %v589 = vpack.c.b16 %v578, %v577
    %v590 = vpack.c.b16 %v580, %v579
    %v591 = vpack.c.b16 %v582, %v581
    %v592 = vpack.c.b16 %v584, %v583
    %601 = vmatprep.subr.bf16.mxu0 0
    %602 = vmatpush1.bf16.msra.mxu0 %v585
    %603 = vmatprep.subr.bf16.mxu0 0
    %604 = vmatpush1.bf16.msra.mxu0 %v586
    %605 = vmatprep.subr.bf16.mxu0 0
    %606 = vmatpush1.bf16.msra.mxu0 %v587
    %607 = vmatprep.subr.bf16.mxu0 0
    %608 = vmatpush1.bf16.msra.mxu0 %v588
    %609 = vmatprep.subr.bf16.mxu0 0
    %610 = vmatpush1.bf16.msra.mxu0 %v589
    %611 = vmatprep.subr.bf16.mxu0 0
    %612 = vmatpush1.bf16.msra.mxu0 %v590
    %613 = vmatprep.subr.bf16.mxu0 0
    %614 = vmatpush1.bf16.msra.mxu0 %v591
    %615 = vmatprep.subr.bf16.mxu0 0
    %616 = vmatpush1.bf16.msra.mxu0 %v592
    %617 = vmatprep.subr.bf16.mxu0 0
    %618 = vmatpush1.bf16.msra.mxu0 0
    %619 = vmatprep.subr.bf16.mxu0 0
    %620 = vmatpush1.bf16.msra.mxu0 0
    %621 = vmatprep.subr.bf16.mxu0 0
    %622 = vmatpush1.bf16.msra.mxu0 0
    %623 = vmatprep.subr.bf16.mxu0 0
    %624 = vmatpush1.bf16.msra.mxu0 0
    %625 = vmatprep.subr.bf16.mxu0 0
    %626 = vmatpush1.bf16.msra.mxu0 0
    %627 = vmatprep.subr.bf16.mxu0 0
    %628 = vmatpush1.bf16.msra.mxu0 0
    %629 = vmatprep.subr.bf16.mxu0 0
    %630 = vmatpush1.bf16.msra.mxu0 0
    %631 = vmatprep.subr.bf16.mxu0 0
    %632 = vmatpush1.bf16.msra.mxu0 0
    %633 = vmatprep.mubr.bf16.mxu0 0
    %634 = vmatmul.mubr.bf16.gmra.mrb[0].mxu0 %v387
    %v635 = vpop.f32.mrb[0].mxu0
    %v636 = vadd.f32 0.0, %v635
    %v637 = vpop.f32.mrb[0].mxu0
    %v638 = vpop.f32.mrb[0].mxu0
    %v639 = vadd.f32 0.0, %v638
    %v640 = vpop.f32.mrb[0].mxu0
    %641 = vdwg.mxu0
    %v642 = vadd.f32 %v535, %v636
    %v643 = vadd.f32 %v536, %v639
    %v644 = vld [vmem:[%s8] sm:$0x1]
    %v646 = vlaneseq
    %v647 = vshrl.u32 %v646, 7
    %v648 = vsub.s32 0, %v647
    %v649 = vrot.slane %v644, %v648
    %v651 = vadd.f32 %v642, %v649
    %v652 = vadd.f32 %v643, %v649
    %653 = vst [vmem:[#allocation10] sm:$0xff] %v651
    %654 = vst [vmem:[#allocation10 + $0x8] sm:$0xff] %v652
    // Predicated region
    $region54: #{tpu_custom_call.1} parent=1 // pred_check
      _
    $region55: #{tpu_custom_call.1} parent=1 // pred_check_branch
      %656 = sbr.rel (0) target = $region57
    $region56: #{tpu_custom_call.1} parent=1 // pred_region
      %s658 = ssub.s32 256, 256
      %659 = vsyncadd [#allocation4], %s658
      %s660 = sshll.u32 [#allocation10], 4
      %s661 = int_to_ptr.vmem [resolvable:$true] %s660
      %666 = dma.vmem_to_hbm [thread:$0]  %s661, 256, %s9, [#allocation4], 128, 128, 8
    $region57: #{tpu_custom_call.1} parent=1 // pred_fallthru
      _
    // Predicated region
    $region58: #{tpu_custom_call.1} parent=1 // pred_check
      _
    $region59: #{tpu_custom_call.1} parent=1 // pred_check_branch
      %668 = sbr.rel (0) target = $region61
    $region60: #{tpu_custom_call.1} parent=1 // pred_region
      %669 = dma.done [#allocation4], 256
    $region61: #{tpu_custom_call.1} parent=1 // pred_fallthru
      _
    %670 = vsyncpa [#allocation3], 1
    %671 = vsyncpa [#allocation6], 1
    %672 = vsyncpa [#allocation9], 1
    %673 = vsyncpa [#allocation4], 1

</llo_original>
